<compile_context>
chip_gen: v5e
topology: v5e:2x2
jax: 0.10.0
libtpu: 0.0.40
codegen_flags: <defaults>
</compile_context>

<pallas_src>
import functools
import math

import jax
import jax.numpy as jnp
from jax.experimental import pallas as pl
from jax.experimental.pallas import tpu as pltpu


# ----------------------------- Pallas kernel --------------------------------


def _fused_mha_kernel(x_ref, lat_ref, wq_ref, bq_ref, wkv_ref, bkv_ref, m_ref,
                      o_ref, k_sc, v_sc, *, num_heads, head_size, scale):
    # x:   [1, tq, H]   query-side block of former_seq (pre-projection)
    # lat: [1, Sk, H]   latter_seq for this batch (only used at qi == 0)
    # wq:  [H, H], bq: [1, H]           (resident across the grid)
    # wkv: [H, 2H], bkv: [1, 2H]        (resident; K|V weights concatenated)
    # m:   [1, 1, Sk]   additive key-padding mask (broadcast over heads, rows)
    # o:   [1, tq, H]   context, already in [B, Sq, H] layout (lane-dense)
    # k_sc/v_sc: VMEM scratch [NH, Sk, Dh] bf16, reused across q-tiles.
    H = num_heads * head_size
    Dh = head_size

    # ---- fused K|V projection: once per batch (qi == 0), kept in VMEM ------
    @pl.when(pl.program_id(1) == 0)
    def _():
        lat = lat_ref[0].astype(jnp.bfloat16)                       # [Sk, H]
        kv = (
            jnp.dot(lat, wkv_ref[...].astype(jnp.bfloat16),
                    preferred_element_type=jnp.float32)
            + bkv_ref[...]
        )                                                           # [Sk, 2H] f32
        # Head-split ONCE per batch into [NH, Sk, Dh] bf16 scratch.
        k_sc[...] = jnp.stack(
            [kv[:, h * Dh:(h + 1) * Dh] for h in range(num_heads)],
            axis=0).astype(jnp.bfloat16)
        v_sc[...] = jnp.stack(
            [kv[:, H + h * Dh:H + (h + 1) * Dh] for h in range(num_heads)],
            axis=0).astype(jnp.bfloat16)

    # ---- fused Q projection; 1/sqrt(Dh) folded into Q ----------------------
    x = x_ref[0].astype(jnp.bfloat16)                               # [tq, H]
    q_all = (
        jnp.dot(x, wq_ref[...].astype(jnp.bfloat16),
                preferred_element_type=jnp.float32)
        + bq_ref[...]
    ) * scale                                                       # [tq, H] f32
    q_heads = jnp.stack(
        [q_all[:, h * Dh:(h + 1) * Dh] for h in range(num_heads)],
        axis=0).astype(jnp.bfloat16)                                # [NH, tq, Dh]

    # ---- batched-over-heads attention, softmax in f32 ----------------------
    s = jnp.einsum("nqd,nkd->nqk", q_heads, k_sc[...],
                   preferred_element_type=jnp.float32)              # [NH, tq, Sk]
    s = s + m_ref[...]                                              # [1,1,Sk] bcast
    s = s - jnp.max(s, axis=-1, keepdims=True)
    p = jnp.exp(s)
    p = p * pl.reciprocal(jnp.sum(p, axis=-1, keepdims=True), approx=True)
    ctx = jnp.einsum("nqk,nkd->nqd", p.astype(jnp.bfloat16), v_sc[...],
                     preferred_element_type=jnp.float32)            # [NH, tq, Dh]

    # merge heads -> single lane-dense [tq, H] store in [B, Sq, H] order
    o_ref[0] = jnp.concatenate(
        [ctx[h] for h in range(num_heads)], axis=-1).astype(o_ref.dtype)


# ------------------------------- Wrappers ------------------------------------


def _vmem_limit_bytes():
    """Generation-aware scoped-VMEM budget (leave headroom below physical)."""
    try:
        cap = pltpu.get_tpu_info().vmem_capacity_bytes
    except Exception:
        cap = 64 << 20  # conservative: v7x physical VMEM per TC
    return int(min(cap * 7 // 8, 100 << 20))


def prepare_params(wq, bq, wk, bk, wv, bv):
    """Done ONCE at init time (not per forward): concat K|V weights / biases."""
    H = wq.shape[0]
    return {
        "wq": wq,
        "bq": bq.reshape(1, H),
        "w_kv": jnp.concatenate([wk, wv], axis=1),                  # [H, 2H]
        "b_kv": jnp.concatenate([bk, bv], axis=0).reshape(1, 2 * H),
    }


def multihead_attention_forward(params, former_seq, latter_seq, attention_mask,
                                num_heads, *, tq=None):
    """Reproduces Multihead_Attention.forward (eval mode).

    former_seq: [B, Sq, H]  (queries)
    latter_seq: [B, Sk, H]  (keys / values)
    attention_mask: [B, 1, 1, Sk] additive key-padding mask
    returns:    [B, Sq, H]
    """
    B, Sq, H = former_seq.shape
    Sk = latter_seq.shape[1]
    Dh = H // num_heads
    scale = 1.0 / math.sqrt(Dh)
    if tq is None:
        tq = Sq if Sq <= 256 else 256
    nq = pl.cdiv(Sq, tq)

    mask3 = attention_mask.reshape(B, 1, Sk).astype(jnp.float32)

    kernel = functools.partial(_fused_mha_kernel, num_heads=num_heads,
                               head_size=Dh, scale=scale)

    return pl.pallas_call(
        kernel,
        out_shape=jax.ShapeDtypeStruct((B, Sq, H), jnp.float32),
        grid=(B, nq),
        in_specs=[
            pl.BlockSpec((1, tq, H), lambda b, qi: (b, qi, 0)),     # former_seq
            pl.BlockSpec((1, Sk, H), lambda b, qi: (b, 0, 0)),      # latter_seq
            pl.BlockSpec((H, H), lambda b, qi: (0, 0)),             # wq
            pl.BlockSpec((1, H), lambda b, qi: (0, 0)),             # bq
            pl.BlockSpec((H, 2 * H), lambda b, qi: (0, 0)),         # w_kv
            pl.BlockSpec((1, 2 * H), lambda b, qi: (0, 0)),         # b_kv
            pl.BlockSpec((1, 1, Sk), lambda b, qi: (b, 0, 0)),      # mask
        ],
        out_specs=pl.BlockSpec((1, tq, H), lambda b, qi: (b, qi, 0)),
        scratch_shapes=[
            pltpu.VMEM((num_heads, Sk, Dh), jnp.bfloat16),          # K heads
            pltpu.VMEM((num_heads, Sk, Dh), jnp.bfloat16),          # V heads
        ],
        compiler_params=pltpu.CompilerParams(
            dimension_semantics=("parallel", "arbitrary"),
            vmem_limit_bytes=_vmem_limit_bytes()),
    )(former_seq, latter_seq, params["wq"], params["bq"],
      params["w_kv"], params["b_kv"], mask3)


# ------------------------------- Reference -----------------------------------


def reference_forward(raw, former_seq, latter_seq, attention_mask, num_heads):
    B, Sq, H = former_seq.shape
    Sk = latter_seq.shape[1]
    Dh = H // num_heads
    Q = former_seq @ raw["wq"] + raw["bq"]
    K = latter_seq @ raw["wk"] + raw["bk"]
    V = latter_seq @ raw["wv"] + raw["bv"]
    Q4 = Q.reshape(B, Sq, num_heads, Dh).transpose(0, 2, 1, 3)
    K4 = K.reshape(B, Sk, num_heads, Dh).transpose(0, 2, 1, 3)
    V4 = V.reshape(B, Sk, num_heads, Dh).transpose(0, 2, 1, 3)
    scores = jnp.einsum("bhqd,bhkd->bhqk", Q4, K4) / math.sqrt(Dh)
    scores = scores + attention_mask
    probs = jax.nn.softmax(scores, axis=-1)
    ctx = jnp.einsum("bhqk,bhkd->bhqd", probs, V4)
    return ctx.transpose(0, 2, 1, 3).reshape(B, Sq, H)


# --------------------------------- Main ---------------------------------------


if __name__ == "__main__":
    # args.hidden_size = 32, args.num_attention_heads = 4
    B, Sq, Sk, H, NH = 2, 8, 8, 32, 4

    key = jax.random.PRNGKey(0)
    ks = jax.random.split(key, 9)

    # Weights stored as [Hin, Hout] (W^T of nn.Linear layout) so x @ w + b
    # matches nn.Linear.
    scale_init = 1.0 / math.sqrt(H)
    raw = {
        "wq": jax.random.normal(ks[0], (H, H), jnp.float32) * scale_init,
        "bq": jax.random.normal(ks[1], (H,), jnp.float32) * 0.02,
        "wk": jax.random.normal(ks[2], (H, H), jnp.float32) * scale_init,
        "bk": jax.random.normal(ks[3], (H,), jnp.float32) * 0.02,
        "wv": jax.random.normal(ks[4], (H, H), jnp.float32) * scale_init,
        "bv": jax.random.normal(ks[5], (H,), jnp.float32) * 0.02,
    }
    # One-time parameter preparation (K|V concat happens here, not per call).
    params = prepare_params(raw["wq"], raw["bq"], raw["wk"], raw["bk"],
                            raw["wv"], raw["bv"])

    former_seq = jax.random.normal(ks[6], (B, Sq, H), jnp.float32)
    latter_seq = jax.random.normal(ks[7], (B, Sk, H), jnp.float32)

    # BERT-style additive mask: 0 for valid positions, -10000 for padded ones.
    valid = (jax.random.uniform(ks[8], (B, Sk)) > 0.2).astype(jnp.float32)
    valid = valid.at[:, 0].set(1.0)  # each row has at least one valid key
    attention_mask = ((1.0 - valid) * -10000.0).reshape(B, 1, 1, Sk)

    out = multihead_attention_forward(
        params, former_seq, latter_seq, attention_mask, NH)
    out = jax.block_until_ready(out)

    ref = reference_forward(raw, former_seq, latter_seq, attention_mask, NH)
    assert out.shape == (B, Sq, H)
    # Tolerance covers bf16 MXU operands (f32 accumulation / softmax) and the
    # EUP approximate reciprocal in the softmax normalization.
    assert jnp.allclose(out, ref, atol=3e-2, rtol=3e-2), "mismatch vs reference"

    print("KERNEL_OK")
</pallas_src>

<mosaic_0001>
module attributes {stable_mosaic.version = 11 : i64} {
  func.func @_fused_mha_kernel(%arg0: i32, %arg1: i32, %arg2: memref<1x8x32xf32, #tpu.memory_space<vmem>>, %arg3: memref<1x8x32xf32, #tpu.memory_space<vmem>>, %arg4: memref<32x32xf32, #tpu.memory_space<vmem>>, %arg5: memref<1x32xf32, #tpu.memory_space<vmem>>, %arg6: memref<32x64xf32, #tpu.memory_space<vmem>>, %arg7: memref<1x64xf32, #tpu.memory_space<vmem>>, %arg8: memref<1x1x8xf32, #tpu.memory_space<vmem>>, %arg9: memref<1x8x32xf32, #tpu.memory_space<vmem>>, %arg10: memref<4x8x8xbf16, #tpu.memory_space<vmem>>, %arg11: memref<4x8x8xbf16, #tpu.memory_space<vmem>>) attributes {dimension_semantics = [#tpu.dimension_semantics<parallel>, #tpu.dimension_semantics<arbitrary>], iteration_bounds = array<i64: 2, 1>, scalar_prefetch = 0 : i64, scratch_operands = 2 : i64, tpu.core_type = #tpu.core_type<tc>, window_params = [{transform_indices = @transform_0, window_bounds = array<i64: 1, 8, 32>}, {transform_indices = @transform_1, window_bounds = array<i64: 1, 8, 32>}, {pipeline_mode = #tpu.pipeline_mode<synchronous>, transform_indices = @transform_2, window_bounds = array<i64: 32, 32>}, {pipeline_mode = #tpu.pipeline_mode<synchronous>, transform_indices = @transform_3, window_bounds = array<i64: 1, 32>}, {pipeline_mode = #tpu.pipeline_mode<synchronous>, transform_indices = @transform_4, window_bounds = array<i64: 32, 64>}, {pipeline_mode = #tpu.pipeline_mode<synchronous>, transform_indices = @transform_5, window_bounds = array<i64: 1, 64>}, {transform_indices = @transform_6, window_bounds = array<i64: 1, 1, 8>}, {transform_indices = @transform_7, window_bounds = array<i64: 1, 8, 32>}]} {
    %c0_i32 = arith.constant 0 : i32
    %0 = arith.cmpi eq, %arg1, %c0_i32 : i32
    %1 = arith.extui %0 : i1 to i32
    %c0_i32_0 = arith.constant 0 : i32
    %2 = arith.cmpi ne, %1, %c0_i32_0 : i32
    scf.if %2 {
      %c0_24 = arith.constant 0 : index
      %c0_25 = arith.constant 0 : index
      %c0_26 = arith.constant 0 : index
      %54 = vector.load %arg3[%c0_24, %c0_25, %c0_26] : memref<1x8x32xf32, #tpu.memory_space<vmem>>, vector<1x8x32xf32>
      %55 = vector.shape_cast %54 : vector<1x8x32xf32> to vector<8x32xf32>
      %56 = arith.truncf %55 : vector<8x32xf32> to vector<8x32xbf16>
      %c0_27 = arith.constant 0 : index
      %c0_28 = arith.constant 0 : index
      %57 = vector.load %arg6[%c0_27, %c0_28] : memref<32x64xf32, #tpu.memory_space<vmem>>, vector<32x64xf32>
      %58 = arith.truncf %57 : vector<32x64xf32> to vector<32x64xbf16>
      %cst_29 = arith.constant dense<0.000000e+00> : vector<8x64xf32>
      %59 = tpu.matmul %56, %58, %cst_29 {dimension_numbers = #tpu.dot_dimension_numbers<[1], [0], [0], [1], [0, 0, 1, 1], [], []>} : vector<8x32xbf16>, vector<32x64xbf16>, vector<8x64xf32> -> vector<8x64xf32>
      %c0_30 = arith.constant 0 : index
      %c0_31 = arith.constant 0 : index
      %60 = vector.load %arg7[%c0_30, %c0_31] : memref<1x64xf32, #tpu.memory_space<vmem>>, vector<1x64xf32>
      %61 = vector.broadcast %60 : vector<1x64xf32> to vector<8x64xf32>
      %62 = arith.addf %59, %61 : vector<8x64xf32>
      %63 = vector.extract_strided_slice %62 {offsets = [0, 0], sizes = [8, 8], strides = [1, 1]} : vector<8x64xf32> to vector<8x8xf32>
      %64 = vector.extract_strided_slice %62 {offsets = [0, 8], sizes = [8, 8], strides = [1, 1]} : vector<8x64xf32> to vector<8x8xf32>
      %65 = vector.extract_strided_slice %62 {offsets = [0, 16], sizes = [8, 8], strides = [1, 1]} : vector<8x64xf32> to vector<8x8xf32>
      %66 = vector.extract_strided_slice %62 {offsets = [0, 24], sizes = [8, 8], strides = [1, 1]} : vector<8x64xf32> to vector<8x8xf32>
      %67 = vector.shape_cast %63 : vector<8x8xf32> to vector<1x8x8xf32>
      %68 = vector.shape_cast %64 : vector<8x8xf32> to vector<1x8x8xf32>
      %69 = vector.shape_cast %65 : vector<8x8xf32> to vector<1x8x8xf32>
      %70 = vector.shape_cast %66 : vector<8x8xf32> to vector<1x8x8xf32>
      %71 = tpu.concatenate %67, %68, %69, %70 in 0 : vector<1x8x8xf32>, vector<1x8x8xf32>, vector<1x8x8xf32>, vector<1x8x8xf32> -> vector<4x8x8xf32>
      %72 = arith.truncf %71 : vector<4x8x8xf32> to vector<4x8x8xbf16>
      %c0_32 = arith.constant 0 : index
      %c0_33 = arith.constant 0 : index
      %c0_34 = arith.constant 0 : index
      %73 = vector.load %arg10[%c0_32, %c0_33, %c0_34] : memref<4x8x8xbf16, #tpu.memory_space<vmem>>, vector<4x8x8xbf16>
      tpu.vector_store %arg10[%c0_32, %c0_33, %c0_34], %72 {strides = array<i32>} : memref<4x8x8xbf16, #tpu.memory_space<vmem>>, vector<4x8x8xbf16>,
      %74 = vector.extract_strided_slice %62 {offsets = [0, 32], sizes = [8, 8], strides = [1, 1]} : vector<8x64xf32> to vector<8x8xf32>
      %75 = vector.extract_strided_slice %62 {offsets = [0, 40], sizes = [8, 8], strides = [1, 1]} : vector<8x64xf32> to vector<8x8xf32>
      %76 = vector.extract_strided_slice %62 {offsets = [0, 48], sizes = [8, 8], strides = [1, 1]} : vector<8x64xf32> to vector<8x8xf32>
      %77 = vector.extract_strided_slice %62 {offsets = [0, 56], sizes = [8, 8], strides = [1, 1]} : vector<8x64xf32> to vector<8x8xf32>
      %78 = vector.shape_cast %74 : vector<8x8xf32> to vector<1x8x8xf32>
      %79 = vector.shape_cast %75 : vector<8x8xf32> to vector<1x8x8xf32>
      %80 = vector.shape_cast %76 : vector<8x8xf32> to vector<1x8x8xf32>
      %81 = vector.shape_cast %77 : vector<8x8xf32> to vector<1x8x8xf32>
      %82 = tpu.concatenate %78, %79, %80, %81 in 0 : vector<1x8x8xf32>, vector<1x8x8xf32>, vector<1x8x8xf32>, vector<1x8x8xf32> -> vector<4x8x8xf32>
      %83 = arith.truncf %82 : vector<4x8x8xf32> to vector<4x8x8xbf16>
      %c0_35 = arith.constant 0 : index
      %c0_36 = arith.constant 0 : index
      %c0_37 = arith.constant 0 : index
      %84 = vector.load %arg11[%c0_35, %c0_36, %c0_37] : memref<4x8x8xbf16, #tpu.memory_space<vmem>>, vector<4x8x8xbf16>
      tpu.vector_store %arg11[%c0_35, %c0_36, %c0_37], %83 {strides = array<i32>} : memref<4x8x8xbf16, #tpu.memory_space<vmem>>, vector<4x8x8xbf16>,
    } else {
    }
    %c0 = arith.constant 0 : index
    %c0_1 = arith.constant 0 : index
    %c0_2 = arith.constant 0 : index
    %3 = vector.load %arg2[%c0, %c0_1, %c0_2] : memref<1x8x32xf32, #tpu.memory_space<vmem>>, vector<1x8x32xf32>
    %4 = vector.shape_cast %3 : vector<1x8x32xf32> to vector<8x32xf32>
    %5 = arith.truncf %4 : vector<8x32xf32> to vector<8x32xbf16>
    %c0_3 = arith.constant 0 : index
    %c0_4 = arith.constant 0 : index
    %6 = vector.load %arg4[%c0_3, %c0_4] : memref<32x32xf32, #tpu.memory_space<vmem>>, vector<32x32xf32>
    %7 = arith.truncf %6 : vector<32x32xf32> to vector<32x32xbf16>
    %cst = arith.constant dense<0.000000e+00> : vector<8x32xf32>
    %8 = tpu.matmul %5, %7, %cst {dimension_numbers = #tpu.dot_dimension_numbers<[1], [0], [0], [1], [0, 0, 1, 1], [], []>} : vector<8x32xbf16>, vector<32x32xbf16>, vector<8x32xf32> -> vector<8x32xf32>
    %c0_5 = arith.constant 0 : index
    %c0_6 = arith.constant 0 : index
    %9 = vector.load %arg5[%c0_5, %c0_6] : memref<1x32xf32, #tpu.memory_space<vmem>>, vector<1x32xf32>
    %10 = vector.broadcast %9 : vector<1x32xf32> to vector<8x32xf32>
    %11 = arith.addf %8, %10 : vector<8x32xf32>
    %cst_7 = arith.constant 0.353553385 : f32
    %12 = vector.broadcast %cst_7 : f32 to vector<8x32xf32>
    %13 = arith.mulf %11, %12 : vector<8x32xf32>
    %14 = vector.extract_strided_slice %13 {offsets = [0, 0], sizes = [8, 8], strides = [1, 1]} : vector<8x32xf32> to vector<8x8xf32>
    %15 = vector.extract_strided_slice %13 {offsets = [0, 8], sizes = [8, 8], strides = [1, 1]} : vector<8x32xf32> to vector<8x8xf32>
    %16 = vector.extract_strided_slice %13 {offsets = [0, 16], sizes = [8, 8], strides = [1, 1]} : vector<8x32xf32> to vector<8x8xf32>
    %17 = vector.extract_strided_slice %13 {offsets = [0, 24], sizes = [8, 8], strides = [1, 1]} : vector<8x32xf32> to vector<8x8xf32>
    %18 = vector.shape_cast %14 : vector<8x8xf32> to vector<1x8x8xf32>
    %19 = vector.shape_cast %15 : vector<8x8xf32> to vector<1x8x8xf32>
    %20 = vector.shape_cast %16 : vector<8x8xf32> to vector<1x8x8xf32>
    %21 = vector.shape_cast %17 : vector<8x8xf32> to vector<1x8x8xf32>
    %22 = tpu.concatenate %18, %19, %20, %21 in 0 : vector<1x8x8xf32>, vector<1x8x8xf32>, vector<1x8x8xf32>, vector<1x8x8xf32> -> vector<4x8x8xf32>
    %23 = arith.truncf %22 : vector<4x8x8xf32> to vector<4x8x8xbf16>
    %c0_8 = arith.constant 0 : index
    %c0_9 = arith.constant 0 : index
    %c0_10 = arith.constant 0 : index
    %24 = vector.load %arg10[%c0_8, %c0_9, %c0_10] : memref<4x8x8xbf16, #tpu.memory_space<vmem>>, vector<4x8x8xbf16>
    "tpu.trace_start"() <{level = 10 : i32, message = "nqd,nkd->nqk"}> : () -> ()
    %cst_11 = arith.constant dense<0.000000e+00> : vector<4x8x8xf32>
    %25 = tpu.matmul %23, %24, %cst_11 {dimension_numbers = #tpu.dot_dimension_numbers<[2], [2], [1], [1], [0, 0, 0, 1, 1, 1], [0], [0]>} : vector<4x8x8xbf16>, vector<4x8x8xbf16>, vector<4x8x8xf32> -> vector<4x8x8xf32>
    "tpu.trace_stop"() : () -> ()
    %c0_12 = arith.constant 0 : index
    %c0_13 = arith.constant 0 : index
    %c0_14 = arith.constant 0 : index
    %26 = vector.load %arg8[%c0_12, %c0_13, %c0_14] : memref<1x1x8xf32, #tpu.memory_space<vmem>>, vector<1x1x8xf32>
    %27 = vector.broadcast %26 : vector<1x1x8xf32> to vector<4x8x8xf32>
    %28 = arith.addf %25, %27 : vector<4x8x8xf32>
    %cst_15 = arith.constant dense<0xFF800000> : vector<4x8xf32>
    %29 = vector.multi_reduction <maximumf>, %28, %cst_15 [2] : vector<4x8x8xf32> to vector<4x8xf32>
    %30 = vector.shape_cast %29 : vector<4x8xf32> to vector<4x8x1xf32>
    %31 = vector.broadcast %30 : vector<4x8x1xf32> to vector<4x8x8xf32>
    %32 = arith.subf %28, %31 : vector<4x8x8xf32>
    %33 = math.exp %32 : vector<4x8x8xf32>
    %cst_16 = arith.constant dense<0.000000e+00> : vector<4x8xf32>
    %34 = vector.multi_reduction <add>, %33, %cst_16 [2] : vector<4x8x8xf32> to vector<4x8xf32>
    %35 = vector.shape_cast %34 : vector<4x8xf32> to vector<4x8x1xf32>
    %36 = tpu.reciprocal %35 {approx = true} : vector<4x8x1xf32> -> vector<4x8x1xf32>
    %37 = vector.broadcast %36 : vector<4x8x1xf32> to vector<4x8x8xf32>
    %38 = arith.mulf %33, %37 : vector<4x8x8xf32>
    %39 = arith.truncf %38 : vector<4x8x8xf32> to vector<4x8x8xbf16>
    %c0_17 = arith.constant 0 : index
    %c0_18 = arith.constant 0 : index
    %c0_19 = arith.constant 0 : index
    %40 = vector.load %arg11[%c0_17, %c0_18, %c0_19] : memref<4x8x8xbf16, #tpu.memory_space<vmem>>, vector<4x8x8xbf16>
    "tpu.trace_start"() <{level = 10 : i32, message = "nqk,nkd->nqd"}> : () -> ()
    %cst_20 = arith.constant dense<0.000000e+00> : vector<4x8x8xf32>
    %41 = tpu.matmul %39, %40, %cst_20 {dimension_numbers = #tpu.dot_dimension_numbers<[2], [1], [1], [2], [0, 0, 0, 1, 1, 2], [0], [0]>} : vector<4x8x8xbf16>, vector<4x8x8xbf16>, vector<4x8x8xf32> -> vector<4x8x8xf32>
    "tpu.trace_stop"() : () -> ()
    %42 = vector.extract_strided_slice %41 {offsets = [0, 0, 0], sizes = [1, 8, 8], strides = [1, 1, 1]} : vector<4x8x8xf32> to vector<1x8x8xf32>
    %43 = vector.shape_cast %42 : vector<1x8x8xf32> to vector<8x8xf32>
    %44 = vector.extract_strided_slice %41 {offsets = [1, 0, 0], sizes = [1, 8, 8], strides = [1, 1, 1]} : vector<4x8x8xf32> to vector<1x8x8xf32>
    %45 = vector.shape_cast %44 : vector<1x8x8xf32> to vector<8x8xf32>
    %46 = vector.extract_strided_slice %41 {offsets = [2, 0, 0], sizes = [1, 8, 8], strides = [1, 1, 1]} : vector<4x8x8xf32> to vector<1x8x8xf32>
    %47 = vector.shape_cast %46 : vector<1x8x8xf32> to vector<8x8xf32>
    %48 = vector.extract_strided_slice %41 {offsets = [3, 0, 0], sizes = [1, 8, 8], strides = [1, 1, 1]} : vector<4x8x8xf32> to vector<1x8x8xf32>
    %49 = vector.shape_cast %48 : vector<1x8x8xf32> to vector<8x8xf32>
    %50 = tpu.concatenate %43, %45, %47, %49 in 1 : vector<8x8xf32>, vector<8x8xf32>, vector<8x8xf32>, vector<8x8xf32> -> vector<8x32xf32>
    %c0_21 = arith.constant 0 : index
    %c0_22 = arith.constant 0 : index
    %c0_23 = arith.constant 0 : index
    %51 = vector.load %arg9[%c0_21, %c0_22, %c0_23] : memref<1x8x32xf32, #tpu.memory_space<vmem>>, vector<1x8x32xf32>
    %52 = vector.shape_cast %51 : vector<1x8x32xf32> to vector<8x32xf32>
    %53 = vector.shape_cast %50 : vector<8x32xf32> to vector<1x8x32xf32>
    tpu.vector_store %arg9[%c0_21, %c0_22, %c0_23], %53 {strides = array<i32>} : memref<1x8x32xf32, #tpu.memory_space<vmem>>, vector<1x8x32xf32>,
    return
  }
  func.func @transform_0(%arg0: i32, %arg1: i32) -> (i32, i32, i32) {
    %c0_i32 = arith.constant 0 : i32
    %c0_i32_0 = arith.constant 0 : i32
    return %arg0, %arg1, %c0_i32 : i32, i32, i32
  }
  func.func @transform_1(%arg0: i32, %arg1: i32) -> (i32, i32, i32) {
    %c0_i32 = arith.constant 0 : i32
    %c0_i32_0 = arith.constant 0 : i32
    %c0_i32_1 = arith.constant 0 : i32
    return %arg0, %c0_i32, %c0_i32_0 : i32, i32, i32
  }
  func.func @transform_2(%arg0: i32, %arg1: i32) -> (i32, i32) {
    %c0_i32 = arith.constant 0 : i32
    %c0_i32_0 = arith.constant 0 : i32
    %c0_i32_1 = arith.constant 0 : i32
    return %c0_i32, %c0_i32_0 : i32, i32
  }
  func.func @transform_3(%arg0: i32, %arg1: i32) -> (i32, i32) {
    %c0_i32 = arith.constant 0 : i32
    %c0_i32_0 = arith.constant 0 : i32
    %c0_i32_1 = arith.constant 0 : i32
    return %c0_i32, %c0_i32_0 : i32, i32
  }
  func.func @transform_4(%arg0: i32, %arg1: i32) -> (i32, i32) {
    %c0_i32 = arith.constant 0 : i32
    %c0_i32_0 = arith.constant 0 : i32
    %c0_i32_1 = arith.constant 0 : i32
    return %c0_i32, %c0_i32_0 : i32, i32
  }
  func.func @transform_5(%arg0: i32, %arg1: i32) -> (i32, i32) {
    %c0_i32 = arith.constant 0 : i32
    %c0_i32_0 = arith.constant 0 : i32
    %c0_i32_1 = arith.constant 0 : i32
    return %c0_i32, %c0_i32_0 : i32, i32
  }
  func.func @transform_6(%arg0: i32, %arg1: i32) -> (i32, i32, i32) {
    %c0_i32 = arith.constant 0 : i32
    %c0_i32_0 = arith.constant 0 : i32
    %c0_i32_1 = arith.constant 0 : i32
    return %arg0, %c0_i32, %c0_i32_0 : i32, i32, i32
  }
  func.func @transform_7(%arg0: i32, %arg1: i32) -> (i32, i32, i32) {
    %c0_i32 = arith.constant 0 : i32
    %c0_i32_0 = arith.constant 0 : i32
    return %arg0, %arg1, %c0_i32 : i32, i32, i32
  }
}

</mosaic_0001>

<llo_original>
// kernel: tpu_custom_call.1
$region0: #{tpu_custom_call.1}
  #allocation0 [shape = 'u32[]', space=smem, size = 0x4, offset = 0x4, fixed_abs, tag = 'smem constant byte address 0x4 - core index']
  #allocation1 [shape = 'u32[72,128]{1,0:T(1,128)}', space=vmem, size = 0x9000, scoped, tag = 'internal scratch']
  #allocation2 [shape = 'bf16[4,8,8]{2,1,0:T(8,128)(2,1)}', space=vmem, size = 0x2000, scoped, tag = 'scratch operand']
  #allocation3 [shape = 'bf16[4,8,8]{2,1,0:T(8,128)(2,1)}', space=vmem, size = 0x2000, scoped, tag = 'scratch operand']
  %s0 = inlined_call_operand.hbm [shape: f32[2,8,32], index: 0, kind: input, shape index: {}]
  %s1 = inlined_call_operand.hbm [shape: f32[2,8,32], index: 1, kind: input, shape index: {}]
  %s2 = inlined_call_operand.hbm [shape: f32[32,32], index: 2, kind: input, shape index: {}]
  %s3 = inlined_call_operand.vmem [shape: f32[1,32], index: 3, kind: input, shape index: {}]
  %s4 = inlined_call_operand.hbm [shape: f32[32,64], index: 4, kind: input, shape index: {}]
  %s5 = inlined_call_operand.vmem [shape: f32[1,64], index: 5, kind: input, shape index: {}]
  %s6 = inlined_call_operand.vmem [shape: f32[2,1,8], index: 6, kind: input, shape index: {}]
  %s7 = inlined_call_operand.hbm [shape: f32[2,8,32], index: 7, kind: output, shape index: {}]
  %s8 = sld [smem:[#allocation0]]
  $region81: #{tpu_custom_call.1} parent=0
    _
  %s10 = ssub.s32 1, %s8
  %s11 = scalar_select 0, %s10, %s8
  $region1: #{tpu_custom_call.1} parent=0
    #allocation4 [shape = 'u8[8192]{0}', space=vmem, size = 0x2000, scoped, tag = 'input window, operand 0']
    #allocation5 [shape = 's32[2]{0}', space=sflag, size = 0x8, scoped, tag = 'scoped memory for tpu_custom_call.1']
    #allocation6 [shape = 's32[2]{0}', space=sflag, size = 0x8, scoped, tag = 'scoped memory for tpu_custom_call.1']
    #allocation7 [shape = 'u8[8192]{0}', space=vmem, size = 0x2000, scoped, tag = 'input window, operand 1']
    #allocation8 [shape = 's32[2]{0}', space=sflag, size = 0x8, scoped, tag = 'scoped memory for tpu_custom_call.1']
    #allocation9 [shape = 'u8[16384]{0}', space=vmem, size = 0x4000, scoped, tag = 'input window, operand 2, single buffered']
    #allocation10 [shape = 'u8[16384]{0}', space=vmem, size = 0x4000, scoped, tag = 'input window, operand 4, single buffered']
    #allocation11 [shape = 's32[1]{0}', space=sflag, size = 0x4, scoped, tag = 'scoped memory for tpu_custom_call.1']
    #allocation12 [shape = 'u8[8192]{0}', space=vmem, size = 0x2000, scoped, tag = 'output window, operand 0']
    %12 = vsyncpa [#allocation5], 0
    %s13 = scalar_lea.sflag [#allocation5], 1
    %14 = vsyncpa %s13, 0
    %15 = vsyncpa [#allocation8], 0
    %s16 = scalar_lea.sflag [#allocation8], 1
    %17 = vsyncpa %s16, 0
    %18 = vsyncpa [#allocation11], 0
    %19 = vsyncpa [#allocation6], 0
    %s20 = scalar_lea.sflag [#allocation6], 1
    %21 = vsyncpa %s20, 0
    loop: start=0, step=1, limit=4
    $region2: #{tpu_custom_call.1} parent=1 // loop_pre_header
      _
    $region3: #{tpu_custom_call.1} parent=1 // loop_header
      %s23 = sphi 0, %s27
      %p24 = scmp.ge.s32.totalorder %s23, 4
      %s30 = sphi 0, %s42
      %s31 = sphi 0, %s38
      %s32 = sphi 0, %s30
      %s33 = sphi 0, %s31
      %s34 = sphi 0, %s32
      %s35 = sphi 0, %s33
      %s47 = sphi 0, %s49
      %s50 = sphi 0, %s47
      %s51 = sphi 0, %s50
      %s67 = sphi 0, %s51
      %s73 = sphi 0, %s75
      %s76 = sphi 0, %s73
      %s77 = sphi 0, %s76
      %s93 = sphi 0, %s77
      %s97 = sphi 0, %s97
      %s99 = sphi 0, %s97
      %s100 = sphi 0, %s99
      %s114 = sphi 0, %s100
      %s118 = sphi 0, %s118
      %s120 = sphi 0, %s118
      %s121 = sphi 0, %s120
      %s135 = sphi 0, %s121
      %s139 = sphi 0, %s139
      %s141 = sphi 0, %s139
      %s142 = sphi 0, %s141
      %s156 = sphi 0, %s142
      %s160 = sphi 0, %s160
      %s162 = sphi 0, %s160
      %s163 = sphi 0, %s162
      %s177 = sphi 0, %s163
      %s183 = sphi 0, %s185
      %s186 = sphi 0, %s183
      %s187 = sphi 0, %s186
      %s203 = sphi 0, %s187
      %s211 = sphi 0, %s213
      %s214 = sphi 0, %s211
      %s215 = sphi 0, %s214
      %s231 = sphi 0, %s215
    $region4: #{tpu_custom_call.1} parent=1 // loop_header_branch
      %26 = sbr.rel (%p24) target = $region8
    $region5: #{tpu_custom_call.1} parent=1 // loop_body
      %s28 = ssub.s32 %s23, 1
      %s29 = ssub.s32 %s23, 2
      %s36 = sadd.s32 1, %s31
      %p37 = scmp.ge.s32.totalorder %s36, 1
      %s38 = scalar_select %p37, 0, %s36
      %s39 = sadd.s32 1, %s30
      %s40 = scalar_select %p37, %s39, %s30
      %p41 = scmp.ge.s32.totalorder %s40, 2
      %s42 = scalar_select %p41, 0, %s40
      %s43 = ssub.s32 %s30, %s42
      %s44 = ssub.s32 %s31, %s38
      %s45 = sor.u32 %s43, %s44
      %p46 = scmp.eq.s32.totalorder %s45, 0
      %s48 = sadd.s32 %s47, 1
      %s49 = scalar_select %p46, %s47, %s48
      %p52 = pneg %p46
      %p53 = scmp.eq.s32.totalorder %s23, 1
      %p54 = por %p52, %p53
      %p55 = scmp.ne.s32.totalorder %s47, %s50
      %p56 = scmp.eq.s32.totalorder %s23, 0
      %p57 = por %p55, %p56
      %p58 = scmp.ne.s32.totalorder %s47, %s50
      %p59 = scmp.eq.s32.totalorder %s28, 1
      %p60 = por %p58, %p59
      %p61 = scmp.ne.s32.totalorder %s50, %s51
      %p62 = scmp.eq.s32.totalorder %s28, 0
      %p63 = por %p61, %p62
      %p64 = scmp.ne.s32.totalorder %s50, %s51
      %p65 = scmp.eq.s32.totalorder %s29, 1
      %p66 = por %p64, %p65
      %p68 = scmp.ne.s32.totalorder %s51, %s67
      %p69 = scmp.eq.s32.totalorder %s29, 0
      %p70 = por %p68, %p69
      %s71 = ssub.s32 %s30, %s42
      %p72 = scmp.eq.s32.totalorder %s71, 0
      %s74 = sadd.s32 %s73, 1
      %s75 = scalar_select %p72, %s73, %s74
      %p78 = pneg %p72
      %p79 = scmp.eq.s32.totalorder %s23, 1
      %p80 = por %p78, %p79
      %p81 = scmp.ne.s32.totalorder %s73, %s76
      %p82 = scmp.eq.s32.totalorder %s23, 0
      %p83 = por %p81, %p82
      %p84 = scmp.ne.s32.totalorder %s73, %s76
      %p85 = scmp.eq.s32.totalorder %s28, 1
      %p86 = por %p84, %p85
      %p87 = scmp.ne.s32.totalorder %s76, %s77
      %p88 = scmp.eq.s32.totalorder %s28, 0
      %p89 = por %p87, %p88
      %p90 = scmp.ne.s32.totalorder %s76, %s77
      %p91 = scmp.eq.s32.totalorder %s29, 1
      %p92 = por %p90, %p91
      %p94 = scmp.ne.s32.totalorder %s77, %s93
      %p95 = scmp.eq.s32.totalorder %s29, 0
      %p96 = por %p94, %p95
      %s98 = sadd.s32 %s97, 1
      %p101 = scmp.eq.s32.totalorder %s23, 1
      %p102 = scmp.ne.s32.totalorder %s97, %s99
      %p103 = scmp.eq.s32.totalorder %s23, 0
      %p104 = por %p102, %p103
      %p105 = scmp.ne.s32.totalorder %s97, %s99
      %p106 = scmp.eq.s32.totalorder %s28, 1
      %p107 = por %p105, %p106
      %p108 = scmp.ne.s32.totalorder %s99, %s100
      %p109 = scmp.eq.s32.totalorder %s28, 0
      %p110 = por %p108, %p109
      %p111 = scmp.ne.s32.totalorder %s99, %s100
      %p112 = scmp.eq.s32.totalorder %s29, 1
      %p113 = por %p111, %p112
      %p115 = scmp.ne.s32.totalorder %s100, %s114
      %p116 = scmp.eq.s32.totalorder %s29, 0
      %p117 = por %p115, %p116
      %s119 = sadd.s32 %s118, 1
      %p122 = scmp.eq.s32.totalorder %s23, 1
      %p123 = scmp.ne.s32.totalorder %s118, %s120
      %p124 = scmp.eq.s32.totalorder %s23, 0
      %p125 = por %p123, %p124
      %p126 = scmp.ne.s32.totalorder %s118, %s120
      %p127 = scmp.eq.s32.totalorder %s28, 1
      %p128 = por %p126, %p127
      %p129 = scmp.ne.s32.totalorder %s120, %s121
      %p130 = scmp.eq.s32.totalorder %s28, 0
      %p131 = por %p129, %p130
      %p132 = scmp.ne.s32.totalorder %s120, %s121
      %p133 = scmp.eq.s32.totalorder %s29, 1
      %p134 = por %p132, %p133
      %p136 = scmp.ne.s32.totalorder %s121, %s135
      %p137 = scmp.eq.s32.totalorder %s29, 0
      %p138 = por %p136, %p137
      %s140 = sadd.s32 %s139, 1
      %p143 = scmp.eq.s32.totalorder %s23, 1
      %p144 = scmp.ne.s32.totalorder %s139, %s141
      %p145 = scmp.eq.s32.totalorder %s23, 0
      %p146 = por %p144, %p145
      %p147 = scmp.ne.s32.totalorder %s139, %s141
      %p148 = scmp.eq.s32.totalorder %s28, 1
      %p149 = por %p147, %p148
      %p150 = scmp.ne.s32.totalorder %s141, %s142
      %p151 = scmp.eq.s32.totalorder %s28, 0
      %p152 = por %p150, %p151
      %p153 = scmp.ne.s32.totalorder %s141, %s142
      %p154 = scmp.eq.s32.totalorder %s29, 1
      %p155 = por %p153, %p154
      %p157 = scmp.ne.s32.totalorder %s142, %s156
      %p158 = scmp.eq.s32.totalorder %s29, 0
      %p159 = por %p157, %p158
      %s161 = sadd.s32 %s160, 1
      %p164 = scmp.eq.s32.totalorder %s23, 1
      %p165 = scmp.ne.s32.totalorder %s160, %s162
      %p166 = scmp.eq.s32.totalorder %s23, 0
      %p167 = por %p165, %p166
      %p168 = scmp.ne.s32.totalorder %s160, %s162
      %p169 = scmp.eq.s32.totalorder %s28, 1
      %p170 = por %p168, %p169
      %p171 = scmp.ne.s32.totalorder %s162, %s163
      %p172 = scmp.eq.s32.totalorder %s28, 0
      %p173 = por %p171, %p172
      %p174 = scmp.ne.s32.totalorder %s162, %s163
      %p175 = scmp.eq.s32.totalorder %s29, 1
      %p176 = por %p174, %p175
      %p178 = scmp.ne.s32.totalorder %s163, %s177
      %p179 = scmp.eq.s32.totalorder %s29, 0
      %p180 = por %p178, %p179
      %s181 = ssub.s32 %s30, %s42
      %p182 = scmp.eq.s32.totalorder %s181, 0
      %s184 = sadd.s32 %s183, 1
      %s185 = scalar_select %p182, %s183, %s184
      %p188 = pneg %p182
      %p189 = scmp.eq.s32.totalorder %s23, 1
      %p190 = por %p188, %p189
      %p191 = scmp.ne.s32.totalorder %s183, %s186
      %p192 = scmp.eq.s32.totalorder %s23, 0
      %p193 = por %p191, %p192
      %p194 = scmp.ne.s32.totalorder %s183, %s186
      %p195 = scmp.eq.s32.totalorder %s28, 1
      %p196 = por %p194, %p195
      %p197 = scmp.ne.s32.totalorder %s186, %s187
      %p198 = scmp.eq.s32.totalorder %s28, 0
      %p199 = por %p197, %p198
      %p200 = scmp.ne.s32.totalorder %s186, %s187
      %p201 = scmp.eq.s32.totalorder %s29, 1
      %p202 = por %p200, %p201
      %p204 = scmp.ne.s32.totalorder %s187, %s203
      %p205 = scmp.eq.s32.totalorder %s29, 0
      %p206 = por %p204, %p205
      %s207 = ssub.s32 %s30, %s42
      %s208 = ssub.s32 %s31, %s38
      %s209 = sor.u32 %s207, %s208
      %p210 = scmp.eq.s32.totalorder %s209, 0
      %s212 = sadd.s32 %s211, 1
      %s213 = scalar_select %p210, %s211, %s212
      %p216 = pneg %p210
      %p217 = scmp.eq.s32.totalorder %s23, 1
      %p218 = por %p216, %p217
      %p219 = scmp.ne.s32.totalorder %s211, %s214
      %p220 = scmp.eq.s32.totalorder %s23, 0
      %p221 = por %p219, %p220
      %p222 = scmp.ne.s32.totalorder %s211, %s214
      %p223 = scmp.eq.s32.totalorder %s28, 1
      %p224 = por %p222, %p223
      %p225 = scmp.ne.s32.totalorder %s214, %s215
      %p226 = scmp.eq.s32.totalorder %s28, 0
      %p227 = por %p225, %p226
      %p228 = scmp.ne.s32.totalorder %s214, %s215
      %p229 = scmp.eq.s32.totalorder %s29, 1
      %p230 = por %p228, %p229
      %p232 = scmp.ne.s32.totalorder %s215, %s231
      %p233 = scmp.eq.s32.totalorder %s29, 0
      %p234 = por %p232, %p233
      %p235 = scmp.le.s32.totalorder 1, %s23
      %p236 = scmp.lt.s32.totalorder %s23, 3
      %p237 = pnand %p235, %p236
      %p238 = pneg %p237
      // Predicated region
      $region9: #{tpu_custom_call.1} parent=5 // pred_check
        _
      $region10: #{tpu_custom_call.1} parent=5 // pred_check_branch
        %240 = sbr.rel (%p237) target = $region12
      $region11: #{tpu_custom_call.1} parent=5 // pred_region
        %s241 = ssub.s32 %s23, 1
        // Predicated region
        $region13: #{tpu_custom_call.1} parent=11 // pred_check
          %p242 = pneg %p110
        $region14: #{tpu_custom_call.1} parent=11 // pred_check_branch
          %244 = sbr.rel (%p242) target = $region16
        $region15: #{tpu_custom_call.1} parent=11 // pred_region
          %246 = vsyncadd [#allocation8], 0
          %s247 = sshll.u32 %s2, 4
          %s248 = int_to_ptr.hbm [resolvable:$true] %s247
          %s249 = sshll.u32 [#allocation9], 4
          %s250 = int_to_ptr.vmem [resolvable:$true] %s249
          %255 = dma.hbm_to_vmem [thread:$0]  %s248, 512, %s250, [#allocation8], 128, 128, 8
        $region16: #{tpu_custom_call.1} parent=11 // pred_fallthru
          _
        // Predicated region
        $region17: #{tpu_custom_call.1} parent=11 // pred_check
          %p256 = pneg %p131
        $region18: #{tpu_custom_call.1} parent=11 // pred_check_branch
          %258 = sbr.rel (%p256) target = $region20
        $region19: #{tpu_custom_call.1} parent=11 // pred_region
          _
        $region20: #{tpu_custom_call.1} parent=11 // pred_fallthru
          _
        // Predicated region
        $region21: #{tpu_custom_call.1} parent=11 // pred_check
          %p259 = pneg %p152
        $region22: #{tpu_custom_call.1} parent=11 // pred_check_branch
          %261 = sbr.rel (%p259) target = $region24
        $region23: #{tpu_custom_call.1} parent=11 // pred_region
          %263 = vsyncadd [#allocation11], 0
          %s264 = sshll.u32 %s4, 4
          %s265 = int_to_ptr.hbm [resolvable:$true] %s264
          %s266 = sshll.u32 [#allocation10], 4
          %s267 = int_to_ptr.vmem [resolvable:$true] %s266
          %272 = dma.hbm_to_vmem [thread:$0]  %s265, 512, %s267, [#allocation11], 128, 128, 8
        $region24: #{tpu_custom_call.1} parent=11 // pred_fallthru
          _
        // Predicated region
        $region25: #{tpu_custom_call.1} parent=11 // pred_check
          %p273 = pneg %p173
        $region26: #{tpu_custom_call.1} parent=11 // pred_check_branch
          %275 = sbr.rel (%p273) target = $region28
        $region27: #{tpu_custom_call.1} parent=11 // pred_region
          _
        $region28: #{tpu_custom_call.1} parent=11 // pred_fallthru
          _
      $region12: #{tpu_custom_call.1} parent=5 // pred_fallthru
        _
      %p276 = scmp.lt.s32.totalorder %s23, 2
      // Predicated region
      $region29: #{tpu_custom_call.1} parent=5 // pred_check
        %p277 = pneg %p276
      $region30: #{tpu_custom_call.1} parent=5 // pred_check_branch
        %279 = sbr.rel (%p277) target = $region32
      $region31: #{tpu_custom_call.1} parent=5 // pred_region
        // Predicated region
        $region33: #{tpu_custom_call.1} parent=31 // pred_check
          %p280 = pneg %p57
        $region34: #{tpu_custom_call.1} parent=31 // pred_check_branch
          %282 = sbr.rel (%p280) target = $region36
        $region35: #{tpu_custom_call.1} parent=31 // pred_region
          %s283 = sand.u32 %s47, 1
          %s284 = scalar_lea.sflag [#allocation5], %s283
          %s285 = sand.u32 %s47, 1
          %s286 = smul.addr %s285, 8
          %s287 = scalar_lea.vmem [#allocation4], %s286
          %289 = vsyncadd %s284, 0
          %s290 = sadd.s32 %s31, %s30
          %s291 = smul.addr %s290, 8
          %s292 = scalar_lea.hbm %s0, %s291
          %s294 = sshll.u32 %s292, 4
          %s295 = int_to_ptr.hbm [resolvable:$true] %s294
          %s296 = sshll.u32 %s287, 4
          %s297 = int_to_ptr.vmem [resolvable:$true] %s296
          %299 = dma.hbm_to_vmem [thread:$0]  %s295, 128, %s297, %s284
        $region36: #{tpu_custom_call.1} parent=31 // pred_fallthru
          _
        // Predicated region
        $region37: #{tpu_custom_call.1} parent=31 // pred_check
          %p300 = pneg %p83
        $region38: #{tpu_custom_call.1} parent=31 // pred_check_branch
          %302 = sbr.rel (%p300) target = $region40
        $region39: #{tpu_custom_call.1} parent=31 // pred_region
          %s303 = sand.u32 %s23, 1
          %s304 = scalar_lea.sflag [#allocation8], %s303
          %s305 = sand.u32 %s73, 1
          %s306 = smul.addr %s305, 8
          %s307 = scalar_lea.vmem [#allocation7], %s306
          %309 = vsyncadd %s304, 0
          %s310 = smul.addr %s30, 8
          %s311 = scalar_lea.hbm %s1, %s310
          %s313 = sshll.u32 %s311, 4
          %s314 = int_to_ptr.hbm [resolvable:$true] %s313
          %s315 = sshll.u32 %s307, 4
          %s316 = int_to_ptr.vmem [resolvable:$true] %s315
          %318 = dma.hbm_to_vmem [thread:$0]  %s314, 128, %s316, %s304
        $region40: #{tpu_custom_call.1} parent=31 // pred_fallthru
          _
        // Predicated region
        $region41: #{tpu_custom_call.1} parent=31 // pred_check
          %p319 = pneg %p193
        $region42: #{tpu_custom_call.1} parent=31 // pred_check_branch
          %321 = sbr.rel (%p319) target = $region44
        $region43: #{tpu_custom_call.1} parent=31 // pred_region
          %p322 = scmp.lt.s32.totalorder %s30, 1
          %s323 = scalar_select %p322, %s30, 1
          %s324 = scalar_lea.vmem %s6, %s323
        $region44: #{tpu_custom_call.1} parent=31 // pred_fallthru
          _
      $region32: #{tpu_custom_call.1} parent=5 // pred_fallthru
        _
      %p325 = scmp.le.s32.totalorder 1, %s23
      %p326 = scmp.lt.s32.totalorder %s23, 3
      %p327 = pnand %p325, %p326
      %p328 = pneg %p327
      // Predicated region
      $region45: #{tpu_custom_call.1} parent=5 // pred_check
        _
      $region46: #{tpu_custom_call.1} parent=5 // pred_check_branch
        %330 = sbr.rel (%p327) target = $region48
      $region47: #{tpu_custom_call.1} parent=5 // pred_region
        %s331 = ssub.s32 %s23, 1
        %s332 = sand.u32 %s50, 1
        %s333 = scalar_lea.sflag [#allocation5], %s332
        %s334 = sand.u32 %s50, 1
        %s335 = smul.addr %s334, 8
        %s336 = scalar_lea.vmem [#allocation4], %s335
        // Predicated region
        $region49: #{tpu_custom_call.1} parent=47 // pred_check
          %p337 = pneg %p63
        $region50: #{tpu_custom_call.1} parent=47 // pred_check_branch
          %339 = sbr.rel (%p337) target = $region52
        $region51: #{tpu_custom_call.1} parent=47 // pred_region
          %341 = dma.done %s333, 128
        $region52: #{tpu_custom_call.1} parent=47 // pred_fallthru
          _
        %s342 = sand.u32 %s28, 1
        %s343 = scalar_lea.sflag [#allocation8], %s342
        %s344 = sand.u32 %s76, 1
        %s345 = smul.addr %s344, 8
        %s346 = scalar_lea.vmem [#allocation7], %s345
        // Predicated region
        $region53: #{tpu_custom_call.1} parent=47 // pred_check
          %p347 = pneg %p89
        $region54: #{tpu_custom_call.1} parent=47 // pred_check_branch
          %349 = sbr.rel (%p347) target = $region56
        $region55: #{tpu_custom_call.1} parent=47 // pred_region
          %351 = dma.done %s343, 128
        $region56: #{tpu_custom_call.1} parent=47 // pred_fallthru
          _
        // Predicated region
        $region57: #{tpu_custom_call.1} parent=47 // pred_check
          %p352 = pneg %p110
        $region58: #{tpu_custom_call.1} parent=47 // pred_check_branch
          %354 = sbr.rel (%p352) target = $region60
        $region59: #{tpu_custom_call.1} parent=47 // pred_region
          %356 = dma.done [#allocation8], 512
        $region60: #{tpu_custom_call.1} parent=47 // pred_fallthru
          _
        // Predicated region
        $region61: #{tpu_custom_call.1} parent=47 // pred_check
          %p357 = pneg %p152
        $region62: #{tpu_custom_call.1} parent=47 // pred_check_branch
          %359 = sbr.rel (%p357) target = $region64
        $region63: #{tpu_custom_call.1} parent=47 // pred_region
          %361 = dma.done [#allocation11], 512
        $region64: #{tpu_custom_call.1} parent=47 // pred_fallthru
          _
        %s362 = sand.u32 %s50, 1
        %s363 = scalar_lea.sflag [#allocation5], %s362
        %s364 = sand.u32 %s50, 1
        %s365 = smul.addr %s364, 8
        %s366 = scalar_lea.vmem [#allocation4], %s365
        %p367 = pneg %p63
        %p368 = pneg %p60
        %s369 = sand.u32 %s28, 1
        %s370 = scalar_lea.sflag [#allocation8], %s369
        %s371 = sand.u32 %s76, 1
        %s372 = smul.addr %s371, 8
        %s373 = scalar_lea.vmem [#allocation7], %s372
        %p374 = pneg %p89
        %p375 = pneg %p86
        %p376 = pneg %p110
        %p377 = pneg %p107
        %p378 = pneg %p131
        %p379 = pneg %p128
        %p380 = pneg %p152
        %p381 = pneg %p149
        %p382 = pneg %p173
        %p383 = pneg %p170
        %p384 = scmp.lt.s32.totalorder %s32, 1
        %s385 = scalar_select %p384, %s32, 1
        %s386 = scalar_lea.vmem %s6, %s385
        %p387 = pneg %p199
        %p388 = pneg %p196
        %p389 = pneg %p227
        %p390 = pneg %p224
        %s391 = sand.u32 %s214, 1
        %s392 = scalar_lea.sflag [#allocation6], %s391
        %s393 = sand.u32 %s214, 1
        %s394 = smul.addr %s393, 8
        %s395 = scalar_lea.vmem [#allocation12], %s394
        %p396 = scmp.lt.s32.totalorder %s32, 1
        %s397 = scalar_select %p396, %s32, 1
        %s398 = scalar_lea.vmem %s6, %s397
        %p400 = scmp.eq.s32.totalorder %s33, 0
        // Predicated region
        $region65: #{tpu_custom_call.1} parent=47 // pred_check
          %p401 = pneg %p400
        $region66: #{tpu_custom_call.1} parent=47 // pred_check_branch
          %403 = sbr.rel (%p401) target = $region68
        $region67: #{tpu_custom_call.1} parent=47 // pred_region
          %v404 = vld [vmem:[%s346] sm:$0xff]
          %v405 = vpack.c.bf16 %v404, %v404
          %v406 = vld [vmem:[#allocation10] sm:$0xff]
          %v407 = vld [vmem:[#allocation10 + $0x8] sm:$0xff]
          %v408 = vld [vmem:[#allocation10 + $0x10] sm:$0xff]
          %v409 = vld [vmem:[#allocation10 + $0x18] sm:$0xff]
          %v410 = vpack.c.bf16 %v407, %v406
          %v411 = vpack.c.bf16 %v409, %v408
          %v412 = vld [vmem:[%s5] sm:$0x1]
          %v414 = vperm.slane %v412, 0
          %vm416 = vcmask 261120
          %v418 = vsel %vm416, %v405, 0
          %420 = vmatpush.bf16.msra.mxu0 0
          %421 = vmatpush.bf16.msra.mxu0 0
          %422 = vmatpush.bf16.msra.mxu0 0
          %423 = vmatpush.bf16.msra.mxu0 0
          %424 = vmatpush.bf16.msra.mxu0 0
          %425 = vmatpush.bf16.msra.mxu0 0
          %426 = vmatpush.bf16.msra.mxu0 %v411
          %427 = vmatpush.bf16.msra.mxu0 %v410
          %428 = vmatmul.bf16.gmra.mxu0 %v418
          %v429 = vpop.f32.mrf.mxu0
          %v430 = vadd.f32 %v414, %v429
          %v431 = vpop.f32.mrf.mxu0
          %432 = vdwg.mxu0
          %434 = vrot.lane.b32.xlu0 %v430, 120
          %v435 = vpop.permute.xlu0 %434
          %437 = vrot.lane.b32.xlu0 %v430, 112
          %v438 = vpop.permute.xlu0 %437
          %440 = vrot.lane.b32.xlu0 %v430, 104
          %v441 = vpop.permute.xlu0 %440
          %v443 = vpack.c.bf16 %v430, %v430
          %v444 = vpack.c.bf16 %v435, %v435
          %v445 = vpack.c.bf16 %v438, %v438
          %v446 = vpack.c.bf16 %v441, %v441
          %vm447 = vcmask 60416
          %448 = vst.msk [vmem:[#allocation2] sm:$0xf] %vm447, %v443
          %449 = vst.msk [vmem:[#allocation2 + $0x4] sm:$0xf] %vm447, %v444
          %450 = vst.msk [vmem:[#allocation2 + $0x8] sm:$0xf] %vm447, %v445
          %451 = vst.msk [vmem:[#allocation2 + $0xc] sm:$0xf] %vm447, %v446
          %456 = vrot.lane.b32.xlu0 %v443, 96
          %v457 = vpop.permute.xlu0 %456
          %458 = vrot.lane.b32.xlu0 %v444, 96
          %v459 = vpop.permute.xlu0 %458
          %460 = vrot.lane.b32.xlu0 %v445, 96
          %v461 = vpop.permute.xlu0 %460
          %462 = vrot.lane.b32.xlu0 %v446, 96
          %v463 = vpop.permute.xlu0 %462
          %468 = vst.msk [vmem:[#allocation3] sm:$0xf] %vm447, %v457
          %469 = vst.msk [vmem:[#allocation3 + $0x4] sm:$0xf] %vm447, %v459
          %470 = vst.msk [vmem:[#allocation3 + $0x8] sm:$0xf] %vm447, %v461
          %471 = vst.msk [vmem:[#allocation3 + $0xc] sm:$0xf] %vm447, %v463
        $region68: #{tpu_custom_call.1} parent=47 // pred_fallthru
          _
        %v472 = vld [vmem:[%s336] sm:$0xff]
        %v473 = vpack.c.bf16 %v472, %v472
        %v474 = vld [vmem:[#allocation9] sm:$0xff]
        %v475 = vld [vmem:[#allocation9 + $0x8] sm:$0xff]
        %v476 = vld [vmem:[#allocation9 + $0x10] sm:$0xff]
        %v477 = vld [vmem:[#allocation9 + $0x18] sm:$0xff]
        %v478 = vpack.c.bf16 %v475, %v474
        %v479 = vpack.c.bf16 %v477, %v476
        %v480 = vld [vmem:[%s3] sm:$0x1]
        %v482 = vperm.slane %v480, 0
        %vm484 = vcmask 261120
        %v486 = vsel %vm484, %v473, 0
        %488 = vmatpush.bf16.msra.mxu0 0
        %489 = vmatpush.bf16.msra.mxu0 0
        %490 = vmatpush.bf16.msra.mxu0 0
        %491 = vmatpush.bf16.msra.mxu0 0
        %492 = vmatpush.bf16.msra.mxu0 0
        %493 = vmatpush.bf16.msra.mxu0 0
        %494 = vmatpush.bf16.msra.mxu0 %v479
        %495 = vmatpush.bf16.msra.mxu0 %v478
        %496 = vmatmul.bf16.gmra.mxu0 %v486
        %v497 = vpop.f32.mrf.mxu0
        %v498 = vadd.f32 %v482, %v497
        %v499 = vpop.f32.mrf.mxu0
        %500 = vdwg.mxu0
        %v501 = vmul.f32 %v498, 0.35355338
        %503 = vrot.lane.b32.xlu0 %v501, 120
        %v504 = vpop.permute.xlu0 %503
        %506 = vrot.lane.b32.xlu0 %v501, 112
        %v507 = vpop.permute.xlu0 %506
        %509 = vrot.lane.b32.xlu0 %v501, 104
        %v510 = vpop.permute.xlu0 %509
        %v512 = vpack.c.bf16 %v501, %v501
        %v513 = vpack.c.bf16 %v504, %v504
        %v514 = vpack.c.bf16 %v507, %v507
        %v515 = vpack.c.bf16 %v510, %v510
        %v516 = vld [vmem:[#allocation2] sm:$0xf]
        %v517 = vld [vmem:[#allocation2 + $0x4] sm:$0xf]
        %v518 = vld [vmem:[#allocation2 + $0x8] sm:$0xf]
        %v519 = vld [vmem:[#allocation2 + $0xc] sm:$0xf]
        %v520 = vld [vmem:[%s398] sm:$0x1]
        %v522 = vperm.slane %v520, 0
        %vm524 = vcmask 64512
        %v526 = vsel %vm524, %v512, 0
        %v529 = vsel %vm524, %v516, 0
        %531 = vmatpush.bf16.xpose.msra.mxu0 0
        %532 = vmatpush.bf16.xpose.msra.mxu0 0
        %533 = vmatpush.bf16.xpose.msra.mxu0 0
        %534 = vmatpush.bf16.xpose.msra.mxu0 0
        %535 = vmatpush.bf16.xpose.msra.mxu0 0
        %536 = vmatpush.bf16.xpose.msra.mxu0 0
        %537 = vmatpush.bf16.xpose.msra.mxu0 0
        %538 = vmatpush.bf16.xpose.msra.mxu0 %v529
        %539 = vmatmul.bf16.gmra.mxu0 %v526
        %v540 = vpop.f32.mrf.mxu0
        %v541 = vadd.f32 %v522, %v540
        %v542 = vpop.f32.mrf.mxu0
        %543 = vdwg.mxu0
        %v545 = vsel %vm524, %v513, 0
        %v548 = vsel %vm524, %v517, 0
        %550 = vmatpush.bf16.xpose.msra.mxu0 0
        %551 = vmatpush.bf16.xpose.msra.mxu0 0
        %552 = vmatpush.bf16.xpose.msra.mxu0 0
        %553 = vmatpush.bf16.xpose.msra.mxu0 0
        %554 = vmatpush.bf16.xpose.msra.mxu0 0
        %555 = vmatpush.bf16.xpose.msra.mxu0 0
        %556 = vmatpush.bf16.xpose.msra.mxu0 0
        %557 = vmatpush.bf16.xpose.msra.mxu0 %v548
        %558 = vmatmul.bf16.gmra.mxu0 %v545
        %v559 = vpop.f32.mrf.mxu0
        %v560 = vadd.f32 %v522, %v559
        %v561 = vpop.f32.mrf.mxu0
        %562 = vdwg.mxu0
        %v564 = vsel %vm524, %v514, 0
        %v567 = vsel %vm524, %v518, 0
        %569 = vmatpush.bf16.xpose.msra.mxu0 0
        %570 = vmatpush.bf16.xpose.msra.mxu0 0
        %571 = vmatpush.bf16.xpose.msra.mxu0 0
        %572 = vmatpush.bf16.xpose.msra.mxu0 0
        %573 = vmatpush.bf16.xpose.msra.mxu0 0
        %574 = vmatpush.bf16.xpose.msra.mxu0 0
        %575 = vmatpush.bf16.xpose.msra.mxu0 0
        %576 = vmatpush.bf16.xpose.msra.mxu0 %v567
        %577 = vmatmul.bf16.gmra.mxu0 %v564
        %v578 = vpop.f32.mrf.mxu0
        %v579 = vadd.f32 %v522, %v578
        %v580 = vpop.f32.mrf.mxu0
        %581 = vdwg.mxu0
        %v583 = vsel %vm524, %v515, 0
        %v586 = vsel %vm524, %v519, 0
        %588 = vmatpush.bf16.xpose.msra.mxu0 0
        %589 = vmatpush.bf16.xpose.msra.mxu0 0
        %590 = vmatpush.bf16.xpose.msra.mxu0 0
        %591 = vmatpush.bf16.xpose.msra.mxu0 0
        %592 = vmatpush.bf16.xpose.msra.mxu0 0
        %593 = vmatpush.bf16.xpose.msra.mxu0 0
        %594 = vmatpush.bf16.xpose.msra.mxu0 0
        %595 = vmatpush.bf16.xpose.msra.mxu0 %v586
        %596 = vmatmul.bf16.gmra.mxu0 %v583
        %v597 = vpop.f32.mrf.mxu0
        %v598 = vadd.f32 %v522, %v597
        %v599 = vpop.f32.mrf.mxu0
        %600 = vdwg.mxu0
        %v601 = vsel %vm524, %v541, -inf
        %602 = vmax.xlane.f32.xlu0 %v601
        %v603 = vpop.xlane.xlu0 %602
        %v604 = vsel %vm524, %v560, -inf
        %605 = vmax.xlane.f32.xlu0 %v604
        %v606 = vpop.xlane.xlu0 %605
        %v607 = vsel %vm524, %v579, -inf
        %608 = vmax.xlane.f32.xlu0 %v607
        %v609 = vpop.xlane.xlu0 %608
        %v610 = vsel %vm524, %v598, -inf
        %611 = vmax.xlane.f32.xlu0 %v610
        %v612 = vpop.xlane.xlu0 %611
        %v613 = vsub.f32 %v541, %v603
        %v614 = vsub.f32 %v560, %v606
        %v615 = vsub.f32 %v579, %v609
        %v616 = vsub.f32 %v598, %v612
        %v617 = vmul.f32 %v613, 1.442695
        %v618 = vpow.pop %v617
        %v619 = vmul.f32 %v614, 1.442695
        %v620 = vpow.pop %v619
        %v621 = vmul.f32 %v615, 1.442695
        %v622 = vpow.pop %v621
        %v623 = vmul.f32 %v616, 1.442695
        %v624 = vpow.pop %v623
        %v625 = vsel %vm524, %v618, 0.0
        %626 = vadd.xlane.f32.xlu0 %v625
        %v627 = vpop.xlane.xlu0 %626
        %v628 = vsel %vm524, %v620, 0.0
        %629 = vadd.xlane.f32.xlu0 %v628
        %v630 = vpop.xlane.xlu0 %629
        %v631 = vsel %vm524, %v622, 0.0
        %632 = vadd.xlane.f32.xlu0 %v631
        %v633 = vpop.xlane.xlu0 %632
        %v634 = vsel %vm524, %v624, 0.0
        %635 = vadd.xlane.f32.xlu0 %v634
        %v636 = vpop.xlane.xlu0 %635
        %v637 = vrcp.pop %v627
        %v638 = vrcp.pop %v630
        %v639 = vrcp.pop %v633
        %v640 = vrcp.pop %v636
        %v641 = vmul.f32 %v618, %v637
        %v642 = vmul.f32 %v620, %v638
        %v643 = vmul.f32 %v622, %v639
        %v644 = vmul.f32 %v624, %v640
        %v645 = vpack.c.bf16 %v641, %v641
        %v646 = vpack.c.bf16 %v642, %v642
        %v647 = vpack.c.bf16 %v643, %v643
        %v648 = vpack.c.bf16 %v644, %v644
        %v649 = vld [vmem:[#allocation3] sm:$0xf]
        %v650 = vld [vmem:[#allocation3 + $0x4] sm:$0xf]
        %v651 = vld [vmem:[#allocation3 + $0x8] sm:$0xf]
        %v652 = vld [vmem:[#allocation3 + $0xc] sm:$0xf]
        %v654 = vsel %vm524, %v645, 0
        %vm656 = vcmask 1043456
        %v658 = vsel %vm656, %v649, 0
        %660 = vmatpush.bf16.msra.mxu0 0
        %661 = vmatpush.bf16.msra.mxu0 0
        %662 = vmatpush.bf16.msra.mxu0 0
        %663 = vmatpush.bf16.msra.mxu0 0
        %664 = vmatpush.bf16.msra.mxu0 0
        %665 = vmatpush.bf16.msra.mxu0 0
        %666 = vmatpush.bf16.msra.mxu0 0
        %667 = vmatpush.bf16.msra.mxu0 %v658
        %668 = vmatmul.bf16.gmra.mxu0 %v654
        %v669 = vpop.f32.mrf.mxu0
        %v670 = vadd.f32 0.0, %v669
        %v671 = vpop.f32.mrf.mxu0
        %672 = vdwg.mxu0
        %v674 = vsel %vm524, %v646, 0
        %v677 = vsel %vm656, %v650, 0
        %679 = vmatpush.bf16.msra.mxu0 0
        %680 = vmatpush.bf16.msra.mxu0 0
        %681 = vmatpush.bf16.msra.mxu0 0
        %682 = vmatpush.bf16.msra.mxu0 0
        %683 = vmatpush.bf16.msra.mxu0 0
        %684 = vmatpush.bf16.msra.mxu0 0
        %685 = vmatpush.bf16.msra.mxu0 0
        %686 = vmatpush.bf16.msra.mxu0 %v677
        %687 = vmatmul.bf16.gmra.mxu0 %v674
        %v688 = vpop.f32.mrf.mxu0
        %v689 = vadd.f32 0.0, %v688
        %v690 = vpop.f32.mrf.mxu0
        %691 = vdwg.mxu0
        %v693 = vsel %vm524, %v647, 0
        %v696 = vsel %vm656, %v651, 0
        %698 = vmatpush.bf16.msra.mxu0 0
        %699 = vmatpush.bf16.msra.mxu0 0
        %700 = vmatpush.bf16.msra.mxu0 0
        %701 = vmatpush.bf16.msra.mxu0 0
        %702 = vmatpush.bf16.msra.mxu0 0
        %703 = vmatpush.bf16.msra.mxu0 0
        %704 = vmatpush.bf16.msra.mxu0 0
        %705 = vmatpush.bf16.msra.mxu0 %v696
        %706 = vmatmul.bf16.gmra.mxu0 %v693
        %v707 = vpop.f32.mrf.mxu0
        %v708 = vadd.f32 0.0, %v707
        %v709 = vpop.f32.mrf.mxu0
        %710 = vdwg.mxu0
        %v712 = vsel %vm524, %v648, 0
        %v715 = vsel %vm656, %v652, 0
        %717 = vmatpush.bf16.msra.mxu0 0
        %718 = vmatpush.bf16.msra.mxu0 0
        %719 = vmatpush.bf16.msra.mxu0 0
        %720 = vmatpush.bf16.msra.mxu0 0
        %721 = vmatpush.bf16.msra.mxu0 0
        %722 = vmatpush.bf16.msra.mxu0 0
        %723 = vmatpush.bf16.msra.mxu0 0
        %724 = vmatpush.bf16.msra.mxu0 %v715
        %725 = vmatmul.bf16.gmra.mxu0 %v712
        %v726 = vpop.f32.mrf.mxu0
        %v727 = vadd.f32 0.0, %v726
        %v728 = vpop.f32.mrf.mxu0
        %729 = vdwg.mxu0
        %731 = vrot.lane.b32.xlu0 %v689, 8
        %v732 = vpop.permute.xlu0 %731
        %735 = vrot.lane.b32.xlu0 %v708, 16
        %v736 = vpop.permute.xlu0 %735
        %739 = vrot.lane.b32.xlu0 %v727, 24
        %v740 = vpop.permute.xlu0 %739
        %v742 = vsel %vm524, %v670, %v732
        %vm743 = vcmask 130048
        %v744 = vsel %vm743, %v742, %v736
        %vm745 = vcmask 195584
        %v746 = vsel %vm745, %v744, %v740
        %747 = vst.msk [vmem:[%s395] sm:$0xff] %vm484, %v746
        %s748 = sand.u32 %s214, 1
        %s749 = scalar_lea.sflag [#allocation6], %s748
        %s750 = sand.u32 %s214, 1
        %s751 = smul.addr %s750, 8
        %s752 = scalar_lea.vmem [#allocation12], %s751
        // Predicated region
        $region69: #{tpu_custom_call.1} parent=47 // pred_check
          %p753 = pneg %p224
        $region70: #{tpu_custom_call.1} parent=47 // pred_check_branch
          %755 = sbr.rel (%p753) target = $region72
        $region71: #{tpu_custom_call.1} parent=47 // pred_region
          %757 = vsyncadd %s749, 0
          %s758 = sadd.s32 %s33, %s32
          %s759 = smul.addr %s758, 8
          %s760 = scalar_lea.hbm %s7, %s759
          %s762 = sshll.u32 %s752, 4
          %s763 = int_to_ptr.vmem [resolvable:$true] %s762
          %s764 = sshll.u32 %s760, 4
          %s765 = int_to_ptr.hbm [resolvable:$true] %s764
          %767 = dma.vmem_to_hbm [thread:$0]  %s763, 128, %s765, %s749
        $region72: #{tpu_custom_call.1} parent=47 // pred_fallthru
          _
      $region48: #{tpu_custom_call.1} parent=5 // pred_fallthru
        _
      %p768 = scmp.le.s32.totalorder 2, %s23
      // Predicated region
      $region73: #{tpu_custom_call.1} parent=5 // pred_check
        %p769 = pneg %p768
      $region74: #{tpu_custom_call.1} parent=5 // pred_check_branch
        %771 = sbr.rel (%p769) target = $region76
      $region75: #{tpu_custom_call.1} parent=5 // pred_region
        %s772 = ssub.s32 %s23, 2
        // Predicated region
        $region77: #{tpu_custom_call.1} parent=75 // pred_check
          %p773 = pneg %p230
        $region78: #{tpu_custom_call.1} parent=75 // pred_check_branch
          %775 = sbr.rel (%p773) target = $region80
        $region79: #{tpu_custom_call.1} parent=75 // pred_region
          %s776 = sand.u32 %s215, 1
          %s777 = scalar_lea.sflag [#allocation6], %s776
          %s778 = sand.u32 %s215, 1
          %s779 = smul.addr %s778, 8
          %s780 = scalar_lea.vmem [#allocation12], %s779
          %782 = dma.done %s777, 128
        $region80: #{tpu_custom_call.1} parent=75 // pred_fallthru
          _
      $region76: #{tpu_custom_call.1} parent=5 // pred_fallthru
        _
    $region6: #{tpu_custom_call.1} parent=1 // loop_footer
      %s27 = sadd.s32 1, %s23
    $region7: #{tpu_custom_call.1} parent=1 // loop_footer_branch
      %22 = sbr.rel target = $region3
    $region8: #{tpu_custom_call.1} parent=1 // loop_exit
      _
    %783 = vsyncpa [#allocation5], 1
    %s784 = scalar_lea.sflag [#allocation5], 1
    %785 = vsyncpa %s784, 1
    %786 = vsyncpa [#allocation8], 1
    %s787 = scalar_lea.sflag [#allocation8], 1
    %788 = vsyncpa %s787, 1
    %789 = vsyncpa [#allocation11], 1
    %790 = vsyncpa [#allocation6], 1
    %s791 = scalar_lea.sflag [#allocation6], 1
    %792 = vsyncpa %s791, 1

</llo_original>
